<compile_context>
chip_gen: v6e
topology: v6e:2x2x1
jax: 0.10.0
libtpu: 0.0.40
codegen_flags: <defaults>
</compile_context>

<pallas_src>
import jax
import jax.numpy as jnp
from jax.experimental import pallas as pl
from jax.experimental.pallas import tpu as pltpu

_LANE = 128


def _round_up(n, m):
    return ((n + m - 1) // m) * m


def _contranet_kernel(
    x_ref,       # (B, D)        raw flattened image batch
    mean_ref,    # (1, D)        classifier-normalization mean
    istd_ref,    # (1, D)        classifier-normalization 1/std
    wcls_ref,    # (D, NCp)      classifier weight (lane-padded)
    bcls_ref,    # (1, NCp)      classifier bias
    w1_ref,      # (D, KHp)      all detectors' first-layer weights, concat + pad
    b1_ref,      # (1, KHp)      all detectors' first-layer biases
    w2_ref,      # (KHp, Kp)     block-structured second layer (col k = det k)
    b2_ref,      # (1, Kp)       per-detector second-layer bias
    th_ref,      # (1, Kp)       per-detector rejection threshold
    logits_ref,  # (B, NCp)      classifier logits (lane-padded)
    scores_ref,  # (B, Kp)       per-detector scores (lane-dense slab)
    rej_ref,     # (B, Kp) int32 per-detector rejection flags
):
    x = x_ref[...]

    # --- classifier: Normalize -> flatten -> Linear (NC padded to lanes). ---
    x_norm = (x - mean_ref[...]) * istd_ref[...]
    logits_ref[...] = (
        jnp.dot(x_norm, wcls_ref[...], preferred_element_type=jnp.float32)
        + bcls_ref[...]
    )

    # --- all detectors in one shot:
    #     h = relu(x @ W1_cat + b1_cat)       (B, K*H padded)   one wide matmul
    #     s = h @ W2_block + b2               (B, K padded)     lane-dense. ---
    h = jnp.dot(x, w1_ref[...], preferred_element_type=jnp.float32) + b1_ref[...]
    h = jnp.maximum(h, 0.0)
    s = jnp.dot(h, w2_ref[...], preferred_element_type=jnp.float32) + b2_ref[...]

    scores_ref[...] = s
    rej_ref[...] = (s > th_ref[...]).astype(jnp.int32)


@jax.jit
def contranet_dict_forward(img, mean_flat, istd_flat, w_cls, b_cls,
                           w1, b1, w2, b2, thresh):
    """only_rej-mode forward.

    img     : (B, C, H, W) float32, NCHW like PyTorch
    returns : (rej (K, B) int32, all_rej (B,) int32,
               logits_cls (B, NC) float32, scores (K, B) float32)
    """
    B = img.shape[0]
    D = img.shape[1] * img.shape[2] * img.shape[3]
    K, _, H = w1.shape
    NC = w_cls.shape[1]

    NCp = _round_up(NC, _LANE)
    KH = K * H
    KHp = _round_up(KH, _LANE)
    Kp = _round_up(K, _LANE)

    x_flat = img.reshape(B, D)

    # Lane-pad classifier parameters (padded columns are zero -> logits 0).
    w_cls_p = jnp.pad(w_cls, ((0, 0), (0, NCp - NC)))
    b_cls_p = jnp.pad(b_cls, ((0, 0), (0, NCp - NC)))

    # Concatenate detector first layers: (K, D, H) -> (D, K*H), pad to lanes.
    w1_cat = jnp.pad(jnp.transpose(w1, (1, 0, 2)).reshape(D, KH),
                     ((0, 0), (0, KHp - KH)))
    b1_cat = jnp.pad(b1.reshape(1, KH), ((0, 0), (0, KHp - KH)))

    # Block-structured second layer: column k carries detector k's w2 over its
    # H-slice of the concatenated hidden axis; zeros elsewhere / in padding.
    row_idx = jnp.arange(KH)                       # k*H + j
    col_idx = jnp.repeat(jnp.arange(K), H)         # detector index per row
    w2_blk = jnp.zeros((KHp, Kp), jnp.float32).at[row_idx, col_idx].set(
        w2[:, :, 0].reshape(KH))
    b2_row = jnp.zeros((1, Kp), jnp.float32).at[0, :K].set(b2[:, 0, 0])
    # Padded detector lanes get +inf threshold so their rej flags stay 0.
    th_row = jnp.full((1, Kp), jnp.inf, jnp.float32).at[0, :K].set(
        thresh[:, 0, 0])

    out_shapes = (
        jax.ShapeDtypeStruct((B, NCp), jnp.float32),  # logits (padded)
        jax.ShapeDtypeStruct((B, Kp), jnp.float32),   # scores slab
        jax.ShapeDtypeStruct((B, Kp), jnp.int32),     # rej slab
    )

    grid_spec = pltpu.PrefetchScalarGridSpec(
        num_scalar_prefetch=0,
        grid=(1,),
        in_specs=[
            pl.BlockSpec((B, D), lambda i: (0, 0)),        # x_flat
            pl.BlockSpec((1, D), lambda i: (0, 0)),        # mean
            pl.BlockSpec((1, D), lambda i: (0, 0)),        # inv std
            pl.BlockSpec((D, NCp), lambda i: (0, 0)),      # classifier W
            pl.BlockSpec((1, NCp), lambda i: (0, 0)),      # classifier b
            pl.BlockSpec((D, KHp), lambda i: (0, 0)),      # detectors W1 concat
            pl.BlockSpec((1, KHp), lambda i: (0, 0)),      # detectors b1 concat
            pl.BlockSpec((KHp, Kp), lambda i: (0, 0)),     # detectors W2 block
            pl.BlockSpec((1, Kp), lambda i: (0, 0)),       # detectors b2
            pl.BlockSpec((1, Kp), lambda i: (0, 0)),       # thresholds
        ],
        out_specs=[
            pl.BlockSpec((B, NCp), lambda i: (0, 0)),
            pl.BlockSpec((B, Kp), lambda i: (0, 0)),
            pl.BlockSpec((B, Kp), lambda i: (0, 0)),
        ],
    )

    logits_p, scores_p, rej_p = pl.pallas_call(
        _contranet_kernel,
        out_shape=out_shapes,
        grid_spec=grid_spec,
        compiler_params=pltpu.CompilerParams(
            dimension_semantics=("arbitrary",)),
    )(x_flat, mean_flat, istd_flat, w_cls_p, b_cls_p,
      w1_cat, b1_cat, w2_blk, b2_row, th_row)

    logits = logits_p[:, :NC]
    scores = scores_p[:, :K]                        # (B, K)
    rej = rej_p[:, :K]                              # (B, K) int32
    all_rej = jnp.max(rej, axis=1)                  # torch.logical_or over K
    return jnp.transpose(rej), all_rej, logits, jnp.transpose(scores)


def _reference(img, mean_flat, istd_flat, w_cls, b_cls, w1, b1, w2, b2, thresh):
    """Plain-JAX reference mirroring the PyTorch semantics."""
    B = img.shape[0]
    x = img.reshape(B, -1)
    logits = (x - mean_flat) * istd_flat @ w_cls + b_cls
    K = w1.shape[0]
    rejs, scores = [], []
    all_rej = jnp.zeros((B,), dtype=jnp.int32)
    for k in range(K):
        h = jnp.maximum(x @ w1[k] + b1[k], 0.0)
        s = (h @ w2[k] + b2[k])[:, 0]
        r = (s > thresh[k, 0, 0]).astype(jnp.int32)
        rejs.append(r)
        scores.append(s)
        all_rej = jnp.maximum(all_rej, r)  # logical_or
    return jnp.stack(rejs), all_rej, logits, jnp.stack(scores)


if __name__ == "__main__":
    B, C, Hs, Ws = 2, 4, 16, 16          # img: (2, 4, 16, 16) NCHW
    D = C * Hs * Ws                      # 1024 (lane-aligned)
    HID = 32                             # detector hidden width
    NC = 10                              # classifier classes
    K = 2                                # number of detectors in the dict

    key = jax.random.PRNGKey(0)
    keys = jax.random.split(key, 8)

    img = jax.random.normal(keys[0], (B, C, Hs, Ws), dtype=jnp.float32)

    # Normalize(mean, std) per channel, expanded to the flattened layout.
    mean_c = jnp.array([0.5, 0.4, 0.45, 0.5], dtype=jnp.float32)
    std_c = jnp.array([0.25, 0.3, 0.2, 0.25], dtype=jnp.float32)
    mean_flat = jnp.repeat(mean_c, Hs * Ws).reshape(1, D)
    istd_flat = (1.0 / jnp.repeat(std_c, Hs * Ws)).reshape(1, D)

    # Deterministic synthetic parameters (no checkpoint load).
    w_cls = jax.random.normal(keys[1], (D, NC), dtype=jnp.float32) * 0.02
    b_cls = jax.random.normal(keys[2], (1, NC), dtype=jnp.float32) * 0.01
    w1 = jax.random.normal(keys[3], (K, D, HID), dtype=jnp.float32) * 0.02
    b1 = jax.random.normal(keys[4], (K, 1, HID), dtype=jnp.float32) * 0.01
    w2 = jax.random.normal(keys[5], (K, HID, 1), dtype=jnp.float32) * 0.1
    b2 = jax.random.normal(keys[6], (K, 1, 1), dtype=jnp.float32) * 0.01
    thresh = jnp.array([0.0, 0.05], dtype=jnp.float32).reshape(K, 1, 1)

    rej, all_rej, logits, scores = contranet_dict_forward(
        img, mean_flat, istd_flat, w_cls, b_cls, w1, b1, w2, b2, thresh)
    jax.block_until_ready((rej, all_rej, logits, scores))

    rej_r, all_rej_r, logits_r, scores_r = _reference(
        img, mean_flat, istd_flat, w_cls, b_cls, w1, b1, w2, b2, thresh)

    assert jnp.allclose(logits, logits_r, atol=2e-3, rtol=2e-3), "logits mismatch"
    assert jnp.allclose(scores, scores_r, atol=2e-3, rtol=2e-3), "scores mismatch"
    assert jnp.array_equal(rej, rej_r), "rej mismatch"
    assert jnp.array_equal(all_rej, all_rej_r), "all_rej mismatch"

    print("KERNEL_OK")
</pallas_src>

<mosaic_0001>
module attributes {stable_mosaic.version = 11 : i64} {
  func.func @_contranet_kernel(%arg0: i32, %arg1: memref<2x1024xf32, #tpu.memory_space<vmem>>, %arg2: memref<1x1024xf32, #tpu.memory_space<vmem>>, %arg3: memref<1x1024xf32, #tpu.memory_space<vmem>>, %arg4: memref<1024x128xf32, #tpu.memory_space<vmem>>, %arg5: memref<1x128xf32, #tpu.memory_space<vmem>>, %arg6: memref<1024x128xf32, #tpu.memory_space<vmem>>, %arg7: memref<1x128xf32, #tpu.memory_space<vmem>>, %arg8: memref<128x128xf32, #tpu.memory_space<vmem>>, %arg9: memref<1x128xf32, #tpu.memory_space<vmem>>, %arg10: memref<1x128xf32, #tpu.memory_space<vmem>>, %arg11: memref<2x128xf32, #tpu.memory_space<vmem>>, %arg12: memref<2x128xf32, #tpu.memory_space<vmem>>, %arg13: memref<2x128xi32, #tpu.memory_space<vmem>>) attributes {dimension_semantics = [#tpu.dimension_semantics<arbitrary>], iteration_bounds = array<i64: 1>, scalar_prefetch = 0 : i64, scratch_operands = 0 : i64, tpu.core_type = #tpu.core_type<tc>, window_params = [{pipeline_mode = #tpu.pipeline_mode<synchronous>, transform_indices = @transform_0, window_bounds = array<i64: 2, 1024>}, {pipeline_mode = #tpu.pipeline_mode<synchronous>, transform_indices = @transform_1, window_bounds = array<i64: 1, 1024>}, {pipeline_mode = #tpu.pipeline_mode<synchronous>, transform_indices = @transform_2, window_bounds = array<i64: 1, 1024>}, {pipeline_mode = #tpu.pipeline_mode<synchronous>, transform_indices = @transform_3, window_bounds = array<i64: 1024, 128>}, {pipeline_mode = #tpu.pipeline_mode<synchronous>, transform_indices = @transform_4, window_bounds = array<i64: 1, 128>}, {pipeline_mode = #tpu.pipeline_mode<synchronous>, transform_indices = @transform_5, window_bounds = array<i64: 1024, 128>}, {pipeline_mode = #tpu.pipeline_mode<synchronous>, transform_indices = @transform_6, window_bounds = array<i64: 1, 128>}, {pipeline_mode = #tpu.pipeline_mode<synchronous>, transform_indices = @transform_7, window_bounds = array<i64: 128, 128>}, {pipeline_mode = #tpu.pipeline_mode<synchronous>, transform_indices = @transform_8, window_bounds = array<i64: 1, 128>}, {pipeline_mode = #tpu.pipeline_mode<synchronous>, transform_indices = @transform_9, window_bounds = array<i64: 1, 128>}, {pipeline_mode = #tpu.pipeline_mode<synchronous>, transform_indices = @transform_10, window_bounds = array<i64: 2, 128>}, {pipeline_mode = #tpu.pipeline_mode<synchronous>, transform_indices = @transform_11, window_bounds = array<i64: 2, 128>}, {pipeline_mode = #tpu.pipeline_mode<synchronous>, transform_indices = @transform_12, window_bounds = array<i64: 2, 128>}]} {
    %c0 = arith.constant 0 : index
    %c0_0 = arith.constant 0 : index
    %0 = vector.load %arg1[%c0, %c0_0] : memref<2x1024xf32, #tpu.memory_space<vmem>>, vector<2x1024xf32>
    %c0_1 = arith.constant 0 : index
    %c0_2 = arith.constant 0 : index
    %1 = vector.load %arg2[%c0_1, %c0_2] : memref<1x1024xf32, #tpu.memory_space<vmem>>, vector<1x1024xf32>
    %2 = vector.broadcast %1 : vector<1x1024xf32> to vector<2x1024xf32>
    %3 = arith.subf %0, %2 : vector<2x1024xf32>
    %c0_3 = arith.constant 0 : index
    %c0_4 = arith.constant 0 : index
    %4 = vector.load %arg3[%c0_3, %c0_4] : memref<1x1024xf32, #tpu.memory_space<vmem>>, vector<1x1024xf32>
    %5 = vector.broadcast %4 : vector<1x1024xf32> to vector<2x1024xf32>
    %6 = arith.mulf %3, %5 : vector<2x1024xf32>
    %c0_5 = arith.constant 0 : index
    %c0_6 = arith.constant 0 : index
    %7 = vector.load %arg4[%c0_5, %c0_6] : memref<1024x128xf32, #tpu.memory_space<vmem>>, vector<1024x128xf32>
    %cst = arith.constant dense<0.000000e+00> : vector<2x128xf32>
    %8 = tpu.matmul %6, %7, %cst {dimension_numbers = #tpu.dot_dimension_numbers<[1], [0], [0], [1], [0, 0, 1, 1], [], []>} : vector<2x1024xf32>, vector<1024x128xf32>, vector<2x128xf32> -> vector<2x128xf32>
    %c0_7 = arith.constant 0 : index
    %c0_8 = arith.constant 0 : index
    %9 = vector.load %arg5[%c0_7, %c0_8] : memref<1x128xf32, #tpu.memory_space<vmem>>, vector<1x128xf32>
    %10 = vector.broadcast %9 : vector<1x128xf32> to vector<2x128xf32>
    %11 = arith.addf %8, %10 : vector<2x128xf32>
    %c0_9 = arith.constant 0 : index
    %c0_10 = arith.constant 0 : index
    %12 = vector.load %arg11[%c0_9, %c0_10] : memref<2x128xf32, #tpu.memory_space<vmem>>, vector<2x128xf32>
    tpu.vector_store %arg11[%c0_9, %c0_10], %11 {strides = array<i32>} : memref<2x128xf32, #tpu.memory_space<vmem>>, vector<2x128xf32>,
    %c0_11 = arith.constant 0 : index
    %c0_12 = arith.constant 0 : index
    %13 = vector.load %arg6[%c0_11, %c0_12] : memref<1024x128xf32, #tpu.memory_space<vmem>>, vector<1024x128xf32>
    %cst_13 = arith.constant dense<0.000000e+00> : vector<2x128xf32>
    %14 = tpu.matmul %0, %13, %cst_13 {dimension_numbers = #tpu.dot_dimension_numbers<[1], [0], [0], [1], [0, 0, 1, 1], [], []>} : vector<2x1024xf32>, vector<1024x128xf32>, vector<2x128xf32> -> vector<2x128xf32>
    %c0_14 = arith.constant 0 : index
    %c0_15 = arith.constant 0 : index
    %15 = vector.load %arg7[%c0_14, %c0_15] : memref<1x128xf32, #tpu.memory_space<vmem>>, vector<1x128xf32>
    %16 = vector.broadcast %15 : vector<1x128xf32> to vector<2x128xf32>
    %17 = arith.addf %14, %16 : vector<2x128xf32>
    %cst_16 = arith.constant 0.000000e+00 : f32
    %18 = vector.broadcast %cst_16 : f32 to vector<2x128xf32>
    %19 = arith.maximumf %17, %18 : vector<2x128xf32>
    %c0_17 = arith.constant 0 : index
    %c0_18 = arith.constant 0 : index
    %20 = vector.load %arg8[%c0_17, %c0_18] : memref<128x128xf32, #tpu.memory_space<vmem>>, vector<128x128xf32>
    %cst_19 = arith.constant dense<0.000000e+00> : vector<2x128xf32>
    %21 = tpu.matmul %19, %20, %cst_19 {dimension_numbers = #tpu.dot_dimension_numbers<[1], [0], [0], [1], [0, 0, 1, 1], [], []>} : vector<2x128xf32>, vector<128x128xf32>, vector<2x128xf32> -> vector<2x128xf32>
    %c0_20 = arith.constant 0 : index
    %c0_21 = arith.constant 0 : index
    %22 = vector.load %arg9[%c0_20, %c0_21] : memref<1x128xf32, #tpu.memory_space<vmem>>, vector<1x128xf32>
    %23 = vector.broadcast %22 : vector<1x128xf32> to vector<2x128xf32>
    %24 = arith.addf %21, %23 : vector<2x128xf32>
    %c0_22 = arith.constant 0 : index
    %c0_23 = arith.constant 0 : index
    %25 = vector.load %arg12[%c0_22, %c0_23] : memref<2x128xf32, #tpu.memory_space<vmem>>, vector<2x128xf32>
    tpu.vector_store %arg12[%c0_22, %c0_23], %24 {strides = array<i32>} : memref<2x128xf32, #tpu.memory_space<vmem>>, vector<2x128xf32>,
    %c0_24 = arith.constant 0 : index
    %c0_25 = arith.constant 0 : index
    %26 = vector.load %arg10[%c0_24, %c0_25] : memref<1x128xf32, #tpu.memory_space<vmem>>, vector<1x128xf32>
    %27 = vector.broadcast %26 : vector<1x128xf32> to vector<2x128xf32>
    %28 = arith.cmpf ogt, %24, %27 : vector<2x128xf32>
    %29 = arith.extui %28 : vector<2x128xi1> to vector<2x128xi32>
    %c0_26 = arith.constant 0 : index
    %c0_27 = arith.constant 0 : index
    %30 = vector.load %arg13[%c0_26, %c0_27] : memref<2x128xi32, #tpu.memory_space<vmem>>, vector<2x128xi32>
    tpu.vector_store %arg13[%c0_26, %c0_27], %29 {strides = array<i32>} : memref<2x128xi32, #tpu.memory_space<vmem>>, vector<2x128xi32>,
    return
  }
  func.func @transform_0(%arg0: i32) -> (i32, i32) {
    %c0_i32 = arith.constant 0 : i32
    %c0_i32_0 = arith.constant 0 : i32
    %c0_i32_1 = arith.constant 0 : i32
    return %c0_i32, %c0_i32_0 : i32, i32
  }
  func.func @transform_1(%arg0: i32) -> (i32, i32) {
    %c0_i32 = arith.constant 0 : i32
    %c0_i32_0 = arith.constant 0 : i32
    %c0_i32_1 = arith.constant 0 : i32
    return %c0_i32, %c0_i32_0 : i32, i32
  }
  func.func @transform_2(%arg0: i32) -> (i32, i32) {
    %c0_i32 = arith.constant 0 : i32
    %c0_i32_0 = arith.constant 0 : i32
    %c0_i32_1 = arith.constant 0 : i32
    return %c0_i32, %c0_i32_0 : i32, i32
  }
  func.func @transform_3(%arg0: i32) -> (i32, i32) {
    %c0_i32 = arith.constant 0 : i32
    %c0_i32_0 = arith.constant 0 : i32
    %c0_i32_1 = arith.constant 0 : i32
    return %c0_i32, %c0_i32_0 : i32, i32
  }
  func.func @transform_4(%arg0: i32) -> (i32, i32) {
    %c0_i32 = arith.constant 0 : i32
    %c0_i32_0 = arith.constant 0 : i32
    %c0_i32_1 = arith.constant 0 : i32
    return %c0_i32, %c0_i32_0 : i32, i32
  }
  func.func @transform_5(%arg0: i32) -> (i32, i32) {
    %c0_i32 = arith.constant 0 : i32
    %c0_i32_0 = arith.constant 0 : i32
    %c0_i32_1 = arith.constant 0 : i32
    return %c0_i32, %c0_i32_0 : i32, i32
  }
  func.func @transform_6(%arg0: i32) -> (i32, i32) {
    %c0_i32 = arith.constant 0 : i32
    %c0_i32_0 = arith.constant 0 : i32
    %c0_i32_1 = arith.constant 0 : i32
    return %c0_i32, %c0_i32_0 : i32, i32
  }
  func.func @transform_7(%arg0: i32) -> (i32, i32) {
    %c0_i32 = arith.constant 0 : i32
    %c0_i32_0 = arith.constant 0 : i32
    %c0_i32_1 = arith.constant 0 : i32
    return %c0_i32, %c0_i32_0 : i32, i32
  }
  func.func @transform_8(%arg0: i32) -> (i32, i32) {
    %c0_i32 = arith.constant 0 : i32
    %c0_i32_0 = arith.constant 0 : i32
    %c0_i32_1 = arith.constant 0 : i32
    return %c0_i32, %c0_i32_0 : i32, i32
  }
  func.func @transform_9(%arg0: i32) -> (i32, i32) {
    %c0_i32 = arith.constant 0 : i32
    %c0_i32_0 = arith.constant 0 : i32
    %c0_i32_1 = arith.constant 0 : i32
    return %c0_i32, %c0_i32_0 : i32, i32
  }
  func.func @transform_10(%arg0: i32) -> (i32, i32) {
    %c0_i32 = arith.constant 0 : i32
    %c0_i32_0 = arith.constant 0 : i32
    %c0_i32_1 = arith.constant 0 : i32
    return %c0_i32, %c0_i32_0 : i32, i32
  }
  func.func @transform_11(%arg0: i32) -> (i32, i32) {
    %c0_i32 = arith.constant 0 : i32
    %c0_i32_0 = arith.constant 0 : i32
    %c0_i32_1 = arith.constant 0 : i32
    return %c0_i32, %c0_i32_0 : i32, i32
  }
  func.func @transform_12(%arg0: i32) -> (i32, i32) {
    %c0_i32 = arith.constant 0 : i32
    %c0_i32_0 = arith.constant 0 : i32
    %c0_i32_1 = arith.constant 0 : i32
    return %c0_i32, %c0_i32_0 : i32, i32
  }
}

</mosaic_0001>

<llo_original>
// kernel: contranet_dict_forward.1
$region0: #{contranet_dict_forward.1}
  #allocation0 [shape = 'u32[]', space=smem, size = 0x4, offset = 0x4, fixed_abs, tag = 'smem constant byte address 0x4 - core index']
  #allocation1 [shape = 'u32[144,128]{1,0:T(1,128)}', space=vmem, size = 0x12000, scoped, tag = 'internal scratch']
  %s0 = inlined_call_operand.vmem [shape: f32[2,1024], index: 0, kind: input, shape index: {}]
  %s1 = inlined_call_operand.vmem [shape: f32[1,1024], index: 1, kind: input, shape index: {}]
  %s2 = inlined_call_operand.vmem [shape: f32[1,1024], index: 2, kind: input, shape index: {}]
  %s3 = inlined_call_operand.vmem [shape: f32[1024,128], index: 3, kind: input, shape index: {}]
  %s4 = inlined_call_operand.vmem [shape: f32[1,128], index: 4, kind: input, shape index: {}]
  %s5 = inlined_call_operand.vmem [shape: f32[1024,128], index: 5, kind: input, shape index: {}]
  %s6 = inlined_call_operand.vmem [shape: f32[1,128], index: 6, kind: input, shape index: {}]
  %s7 = inlined_call_operand.vmem [shape: f32[128,128], index: 7, kind: input, shape index: {}]
  %s8 = inlined_call_operand.vmem [shape: f32[1,128], index: 8, kind: input, shape index: {}]
  %s9 = inlined_call_operand.vmem [shape: f32[1,128], index: 9, kind: input, shape index: {}]
  %s10 = inlined_call_operand.hbm [shape: f32[2,128], index: 10, kind: output, shape index: {0}]
  %s11 = inlined_call_operand.vmem [shape: f32[2,128], index: 11, kind: output, shape index: {1}]
  %s12 = inlined_call_operand.vmem [shape: s32[2,128], index: 12, kind: output, shape index: {2}]
  %13 = xla_tuple %s10, %s11, %s12
  %s14 = sld [smem:[#allocation0]]
  $region66: #{contranet_dict_forward.1} parent=0
    _
  %s16 = ssub.s32 1, %s14
  %s17 = scalar_select 0, %s16, %s14
  $region1: #{contranet_dict_forward.1} parent=0
    #allocation2 [shape = 'u8[1024]{0}', space=vmem, size = 0x400, scoped, tag = 'output window, operand 0, single buffered']
    #allocation3 [shape = 's32[1]{0}', space=sflag, size = 0x4, scoped, tag = 'scoped memory for contranet_dict_forward.1']
    %18 = vsyncpa [#allocation3], 0
    // Predicated region
    $region2: #{contranet_dict_forward.1} parent=1 // pred_check
      _
    $region3: #{contranet_dict_forward.1} parent=1 // pred_check_branch
      %20 = sbr.rel (0) target = $region5
    $region4: #{contranet_dict_forward.1} parent=1 // pred_region
      _
    $region5: #{contranet_dict_forward.1} parent=1 // pred_fallthru
      _
    // Predicated region
    $region6: #{contranet_dict_forward.1} parent=1 // pred_check
      _
    $region7: #{contranet_dict_forward.1} parent=1 // pred_check_branch
      %22 = sbr.rel (0) target = $region9
    $region8: #{contranet_dict_forward.1} parent=1 // pred_region
      _
    $region9: #{contranet_dict_forward.1} parent=1 // pred_fallthru
      _
    // Predicated region
    $region10: #{contranet_dict_forward.1} parent=1 // pred_check
      _
    $region11: #{contranet_dict_forward.1} parent=1 // pred_check_branch
      %24 = sbr.rel (0) target = $region13
    $region12: #{contranet_dict_forward.1} parent=1 // pred_region
      _
    $region13: #{contranet_dict_forward.1} parent=1 // pred_fallthru
      _
    // Predicated region
    $region14: #{contranet_dict_forward.1} parent=1 // pred_check
      _
    $region15: #{contranet_dict_forward.1} parent=1 // pred_check_branch
      %26 = sbr.rel (0) target = $region17
    $region16: #{contranet_dict_forward.1} parent=1 // pred_region
      _
    $region17: #{contranet_dict_forward.1} parent=1 // pred_fallthru
      _
    // Predicated region
    $region18: #{contranet_dict_forward.1} parent=1 // pred_check
      _
    $region19: #{contranet_dict_forward.1} parent=1 // pred_check_branch
      %28 = sbr.rel (0) target = $region21
    $region20: #{contranet_dict_forward.1} parent=1 // pred_region
      _
    $region21: #{contranet_dict_forward.1} parent=1 // pred_fallthru
      _
    // Predicated region
    $region22: #{contranet_dict_forward.1} parent=1 // pred_check
      _
    $region23: #{contranet_dict_forward.1} parent=1 // pred_check_branch
      %30 = sbr.rel (0) target = $region25
    $region24: #{contranet_dict_forward.1} parent=1 // pred_region
      _
    $region25: #{contranet_dict_forward.1} parent=1 // pred_fallthru
      _
    // Predicated region
    $region26: #{contranet_dict_forward.1} parent=1 // pred_check
      _
    $region27: #{contranet_dict_forward.1} parent=1 // pred_check_branch
      %32 = sbr.rel (0) target = $region29
    $region28: #{contranet_dict_forward.1} parent=1 // pred_region
      _
    $region29: #{contranet_dict_forward.1} parent=1 // pred_fallthru
      _
    // Predicated region
    $region30: #{contranet_dict_forward.1} parent=1 // pred_check
      _
    $region31: #{contranet_dict_forward.1} parent=1 // pred_check_branch
      %34 = sbr.rel (0) target = $region33
    $region32: #{contranet_dict_forward.1} parent=1 // pred_region
      _
    $region33: #{contranet_dict_forward.1} parent=1 // pred_fallthru
      _
    // Predicated region
    $region34: #{contranet_dict_forward.1} parent=1 // pred_check
      _
    $region35: #{contranet_dict_forward.1} parent=1 // pred_check_branch
      %36 = sbr.rel (0) target = $region37
    $region36: #{contranet_dict_forward.1} parent=1 // pred_region
      _
    $region37: #{contranet_dict_forward.1} parent=1 // pred_fallthru
      _
    // Predicated region
    $region38: #{contranet_dict_forward.1} parent=1 // pred_check
      _
    $region39: #{contranet_dict_forward.1} parent=1 // pred_check_branch
      %38 = sbr.rel (0) target = $region41
    $region40: #{contranet_dict_forward.1} parent=1 // pred_region
      _
    $region41: #{contranet_dict_forward.1} parent=1 // pred_fallthru
      _
    %v39 = vld [vmem:[%s0] sm:$0xff]
    %v40 = vld [vmem:[%s0 + $0x8] sm:$0xff]
    %v41 = vld [vmem:[%s1] sm:$0xff]
    %v43 = vlaneseq
    %v44 = vshrl.u32 %v43, 7
    %v45 = vsub.s32 0, %v44
    %v46 = vrot.slane %v41, %v45
    %v47 = vlaneseq
    %v48 = vshrl.u32 %v47, 7
    %v49 = vsub.s32 1, %v48
    %v50 = vrot.slane %v41, %v49
    %v51 = vlaneseq
    %v52 = vshrl.u32 %v51, 7
    %v53 = vsub.s32 2, %v52
    %v54 = vrot.slane %v41, %v53
    %v55 = vlaneseq
    %v56 = vshrl.u32 %v55, 7
    %v57 = vsub.s32 3, %v56
    %v58 = vrot.slane %v41, %v57
    %v59 = vlaneseq
    %v60 = vshrl.u32 %v59, 7
    %v61 = vsub.s32 4, %v60
    %v62 = vrot.slane %v41, %v61
    %v63 = vlaneseq
    %v64 = vshrl.u32 %v63, 7
    %v65 = vsub.s32 5, %v64
    %v66 = vrot.slane %v41, %v65
    %v67 = vlaneseq
    %v68 = vshrl.u32 %v67, 7
    %v69 = vsub.s32 6, %v68
    %v70 = vrot.slane %v41, %v69
    %v71 = vlaneseq
    %v72 = vshrl.u32 %v71, 7
    %v73 = vsub.s32 7, %v72
    %v74 = vrot.slane %v41, %v73
    %v75 = vcombine.low %v46, %v50
    %v76 = vcombine.low %v54, %v58
    %v78 = vunpack.c.l.s4 1983009808
    %v79 = vunpack.c.0.s8 %v78
    %v80 = vlaneseq
    %v81 = vshrl.u32 %v80, 7
    %v82 = vsub.s32 %v79, %v81
    %v83 = vrot.slane %v75, %v82
    %v85 = vunpack.c.l.s4 1983009808
    %v86 = vunpack.c.0.s8 %v85
    %v87 = vlaneseq
    %v88 = vshrl.u32 %v87, 7
    %v89 = vsub.s32 %v86, %v88
    %v90 = vrot.slane %v76, %v89
    %v91 = vcombine.low %v83, %v90
    %v92 = vcombine.low %v62, %v66
    %v93 = vcombine.low %v70, %v74
    %v95 = vunpack.c.l.s4 1983009808
    %v96 = vunpack.c.0.s8 %v95
    %v97 = vlaneseq
    %v98 = vshrl.u32 %v97, 7
    %v99 = vsub.s32 %v96, %v98
    %v100 = vrot.slane %v92, %v99
    %v102 = vunpack.c.l.s4 1983009808
    %v103 = vunpack.c.0.s8 %v102
    %v104 = vlaneseq
    %v105 = vshrl.u32 %v104, 7
    %v106 = vsub.s32 %v103, %v105
    %v107 = vrot.slane %v93, %v106
    %v108 = vcombine.low %v100, %v107
    %v111 = vsub.f32 %v39, %v91
    %v112 = vsub.f32 %v40, %v108
    %v113 = vld [vmem:[%s2] sm:$0xff]
    %v115 = vlaneseq
    %v116 = vshrl.u32 %v115, 7
    %v117 = vsub.s32 0, %v116
    %v118 = vrot.slane %v113, %v117
    %v119 = vlaneseq
    %v120 = vshrl.u32 %v119, 7
    %v121 = vsub.s32 1, %v120
    %v122 = vrot.slane %v113, %v121
    %v123 = vlaneseq
    %v124 = vshrl.u32 %v123, 7
    %v125 = vsub.s32 2, %v124
    %v126 = vrot.slane %v113, %v125
    %v127 = vlaneseq
    %v128 = vshrl.u32 %v127, 7
    %v129 = vsub.s32 3, %v128
    %v130 = vrot.slane %v113, %v129
    %v131 = vlaneseq
    %v132 = vshrl.u32 %v131, 7
    %v133 = vsub.s32 4, %v132
    %v134 = vrot.slane %v113, %v133
    %v135 = vlaneseq
    %v136 = vshrl.u32 %v135, 7
    %v137 = vsub.s32 5, %v136
    %v138 = vrot.slane %v113, %v137
    %v139 = vlaneseq
    %v140 = vshrl.u32 %v139, 7
    %v141 = vsub.s32 6, %v140
    %v142 = vrot.slane %v113, %v141
    %v143 = vlaneseq
    %v144 = vshrl.u32 %v143, 7
    %v145 = vsub.s32 7, %v144
    %v146 = vrot.slane %v113, %v145
    %v147 = vcombine.low %v118, %v122
    %v148 = vcombine.low %v126, %v130
    %v150 = vunpack.c.l.s4 1983009808
    %v151 = vunpack.c.0.s8 %v150
    %v152 = vlaneseq
    %v153 = vshrl.u32 %v152, 7
    %v154 = vsub.s32 %v151, %v153
    %v155 = vrot.slane %v147, %v154
    %v157 = vunpack.c.l.s4 1983009808
    %v158 = vunpack.c.0.s8 %v157
    %v159 = vlaneseq
    %v160 = vshrl.u32 %v159, 7
    %v161 = vsub.s32 %v158, %v160
    %v162 = vrot.slane %v148, %v161
    %v163 = vcombine.low %v155, %v162
    %v164 = vcombine.low %v134, %v138
    %v165 = vcombine.low %v142, %v146
    %v167 = vunpack.c.l.s4 1983009808
    %v168 = vunpack.c.0.s8 %v167
    %v169 = vlaneseq
    %v170 = vshrl.u32 %v169, 7
    %v171 = vsub.s32 %v168, %v170
    %v172 = vrot.slane %v164, %v171
    %v174 = vunpack.c.l.s4 1983009808
    %v175 = vunpack.c.0.s8 %v174
    %v176 = vlaneseq
    %v177 = vshrl.u32 %v176, 7
    %v178 = vsub.s32 %v175, %v177
    %v179 = vrot.slane %v165, %v178
    %v180 = vcombine.low %v172, %v179
    %v183 = vmul.f32 %v111, %v163
    %v184 = vmul.f32 %v112, %v180
    %v185 = vld [vmem:[%s3] sm:$0xff]
    %v186 = vld [vmem:[%s3 + $0x8] sm:$0xff]
    %v187 = vld [vmem:[%s3 + $0x10] sm:$0xff]
    %v188 = vld [vmem:[%s3 + $0x18] sm:$0xff]
    %v189 = vld [vmem:[%s3 + $0x20] sm:$0xff]
    %v190 = vld [vmem:[%s3 + $0x28] sm:$0xff]
    %v191 = vld [vmem:[%s3 + $0x30] sm:$0xff]
    %v192 = vld [vmem:[%s3 + $0x38] sm:$0xff]
    %v193 = vld [vmem:[%s3 + $0x40] sm:$0xff]
    %v194 = vld [vmem:[%s3 + $0x48] sm:$0xff]
    %v195 = vld [vmem:[%s3 + $0x50] sm:$0xff]
    %v196 = vld [vmem:[%s3 + $0x58] sm:$0xff]
    %v197 = vld [vmem:[%s3 + $0x60] sm:$0xff]
    %v198 = vld [vmem:[%s3 + $0x68] sm:$0xff]
    %v199 = vld [vmem:[%s3 + $0x70] sm:$0xff]
    %v200 = vld [vmem:[%s3 + $0x78] sm:$0xff]
    %v201 = vld [vmem:[%s3 + $0x80] sm:$0xff]
    %v202 = vld [vmem:[%s3 + $0x88] sm:$0xff]
    %v203 = vld [vmem:[%s3 + $0x90] sm:$0xff]
    %v204 = vld [vmem:[%s3 + $0x98] sm:$0xff]
    %v205 = vld [vmem:[%s3 + $0xa0] sm:$0xff]
    %v206 = vld [vmem:[%s3 + $0xa8] sm:$0xff]
    %v207 = vld [vmem:[%s3 + $0xb0] sm:$0xff]
    %v208 = vld [vmem:[%s3 + $0xb8] sm:$0xff]
    %v209 = vld [vmem:[%s3 + $0xc0] sm:$0xff]
    %v210 = vld [vmem:[%s3 + $0xc8] sm:$0xff]
    %v211 = vld [vmem:[%s3 + $0xd0] sm:$0xff]
    %v212 = vld [vmem:[%s3 + $0xd8] sm:$0xff]
    %v213 = vld [vmem:[%s3 + $0xe0] sm:$0xff]
    %v214 = vld [vmem:[%s3 + $0xe8] sm:$0xff]
    %v215 = vld [vmem:[%s3 + $0xf0] sm:$0xff]
    %v216 = vld [vmem:[%s3 + $0xf8] sm:$0xff]
    %v217 = vld [vmem:[%s3 + $0x100] sm:$0xff]
    %v218 = vld [vmem:[%s3 + $0x108] sm:$0xff]
    %v219 = vld [vmem:[%s3 + $0x110] sm:$0xff]
    %v220 = vld [vmem:[%s3 + $0x118] sm:$0xff]
    %v221 = vld [vmem:[%s3 + $0x120] sm:$0xff]
    %v222 = vld [vmem:[%s3 + $0x128] sm:$0xff]
    %v223 = vld [vmem:[%s3 + $0x130] sm:$0xff]
    %v224 = vld [vmem:[%s3 + $0x138] sm:$0xff]
    %v225 = vld [vmem:[%s3 + $0x140] sm:$0xff]
    %v226 = vld [vmem:[%s3 + $0x148] sm:$0xff]
    %v227 = vld [vmem:[%s3 + $0x150] sm:$0xff]
    %v228 = vld [vmem:[%s3 + $0x158] sm:$0xff]
    %v229 = vld [vmem:[%s3 + $0x160] sm:$0xff]
    %v230 = vld [vmem:[%s3 + $0x168] sm:$0xff]
    %v231 = vld [vmem:[%s3 + $0x170] sm:$0xff]
    %v232 = vld [vmem:[%s3 + $0x178] sm:$0xff]
    %v233 = vld [vmem:[%s3 + $0x180] sm:$0xff]
    %v234 = vld [vmem:[%s3 + $0x188] sm:$0xff]
    %v235 = vld [vmem:[%s3 + $0x190] sm:$0xff]
    %v236 = vld [vmem:[%s3 + $0x198] sm:$0xff]
    %v237 = vld [vmem:[%s3 + $0x1a0] sm:$0xff]
    %v238 = vld [vmem:[%s3 + $0x1a8] sm:$0xff]
    %v239 = vld [vmem:[%s3 + $0x1b0] sm:$0xff]
    %v240 = vld [vmem:[%s3 + $0x1b8] sm:$0xff]
    %v241 = vld [vmem:[%s3 + $0x1c0] sm:$0xff]
    %v242 = vld [vmem:[%s3 + $0x1c8] sm:$0xff]
    %v243 = vld [vmem:[%s3 + $0x1d0] sm:$0xff]
    %v244 = vld [vmem:[%s3 + $0x1d8] sm:$0xff]
    %v245 = vld [vmem:[%s3 + $0x1e0] sm:$0xff]
    %v246 = vld [vmem:[%s3 + $0x1e8] sm:$0xff]
    %v247 = vld [vmem:[%s3 + $0x1f0] sm:$0xff]
    %v248 = vld [vmem:[%s3 + $0x1f8] sm:$0xff]
    %v249 = vld [vmem:[%s3 + $0x200] sm:$0xff]
    %v250 = vld [vmem:[%s3 + $0x208] sm:$0xff]
    %v251 = vld [vmem:[%s3 + $0x210] sm:$0xff]
    %v252 = vld [vmem:[%s3 + $0x218] sm:$0xff]
    %v253 = vld [vmem:[%s3 + $0x220] sm:$0xff]
    %v254 = vld [vmem:[%s3 + $0x228] sm:$0xff]
    %v255 = vld [vmem:[%s3 + $0x230] sm:$0xff]
    %v256 = vld [vmem:[%s3 + $0x238] sm:$0xff]
    %v257 = vld [vmem:[%s3 + $0x240] sm:$0xff]
    %v258 = vld [vmem:[%s3 + $0x248] sm:$0xff]
    %v259 = vld [vmem:[%s3 + $0x250] sm:$0xff]
    %v260 = vld [vmem:[%s3 + $0x258] sm:$0xff]
    %v261 = vld [vmem:[%s3 + $0x260] sm:$0xff]
    %v262 = vld [vmem:[%s3 + $0x268] sm:$0xff]
    %v263 = vld [vmem:[%s3 + $0x270] sm:$0xff]
    %v264 = vld [vmem:[%s3 + $0x278] sm:$0xff]
    %v265 = vld [vmem:[%s3 + $0x280] sm:$0xff]
    %v266 = vld [vmem:[%s3 + $0x288] sm:$0xff]
    %v267 = vld [vmem:[%s3 + $0x290] sm:$0xff]
    %v268 = vld [vmem:[%s3 + $0x298] sm:$0xff]
    %v269 = vld [vmem:[%s3 + $0x2a0] sm:$0xff]
    %v270 = vld [vmem:[%s3 + $0x2a8] sm:$0xff]
    %v271 = vld [vmem:[%s3 + $0x2b0] sm:$0xff]
    %v272 = vld [vmem:[%s3 + $0x2b8] sm:$0xff]
    %v273 = vld [vmem:[%s3 + $0x2c0] sm:$0xff]
    %v274 = vld [vmem:[%s3 + $0x2c8] sm:$0xff]
    %v275 = vld [vmem:[%s3 + $0x2d0] sm:$0xff]
    %v276 = vld [vmem:[%s3 + $0x2d8] sm:$0xff]
    %v277 = vld [vmem:[%s3 + $0x2e0] sm:$0xff]
    %v278 = vld [vmem:[%s3 + $0x2e8] sm:$0xff]
    %v279 = vld [vmem:[%s3 + $0x2f0] sm:$0xff]
    %v280 = vld [vmem:[%s3 + $0x2f8] sm:$0xff]
    %v281 = vld [vmem:[%s3 + $0x300] sm:$0xff]
    %v282 = vld [vmem:[%s3 + $0x308] sm:$0xff]
    %v283 = vld [vmem:[%s3 + $0x310] sm:$0xff]
    %v284 = vld [vmem:[%s3 + $0x318] sm:$0xff]
    %v285 = vld [vmem:[%s3 + $0x320] sm:$0xff]
    %v286 = vld [vmem:[%s3 + $0x328] sm:$0xff]
    %v287 = vld [vmem:[%s3 + $0x330] sm:$0xff]
    %v288 = vld [vmem:[%s3 + $0x338] sm:$0xff]
    %v289 = vld [vmem:[%s3 + $0x340] sm:$0xff]
    %v290 = vld [vmem:[%s3 + $0x348] sm:$0xff]
    %v291 = vld [vmem:[%s3 + $0x350] sm:$0xff]
    %v292 = vld [vmem:[%s3 + $0x358] sm:$0xff]
    %v293 = vld [vmem:[%s3 + $0x360] sm:$0xff]
    %v294 = vld [vmem:[%s3 + $0x368] sm:$0xff]
    %v295 = vld [vmem:[%s3 + $0x370] sm:$0xff]
    %v296 = vld [vmem:[%s3 + $0x378] sm:$0xff]
    %v297 = vld [vmem:[%s3 + $0x380] sm:$0xff]
    %v298 = vld [vmem:[%s3 + $0x388] sm:$0xff]
    %v299 = vld [vmem:[%s3 + $0x390] sm:$0xff]
    %v300 = vld [vmem:[%s3 + $0x398] sm:$0xff]
    %v301 = vld [vmem:[%s3 + $0x3a0] sm:$0xff]
    %v302 = vld [vmem:[%s3 + $0x3a8] sm:$0xff]
    %v303 = vld [vmem:[%s3 + $0x3b0] sm:$0xff]
    %v304 = vld [vmem:[%s3 + $0x3b8] sm:$0xff]
    %v305 = vld [vmem:[%s3 + $0x3c0] sm:$0xff]
    %v306 = vld [vmem:[%s3 + $0x3c8] sm:$0xff]
    %v307 = vld [vmem:[%s3 + $0x3d0] sm:$0xff]
    %v308 = vld [vmem:[%s3 + $0x3d8] sm:$0xff]
    %v309 = vld [vmem:[%s3 + $0x3e0] sm:$0xff]
    %v310 = vld [vmem:[%s3 + $0x3e8] sm:$0xff]
    %v311 = vld [vmem:[%s3 + $0x3f0] sm:$0xff]
    %v312 = vld [vmem:[%s3 + $0x3f8] sm:$0xff]
    %v313 = vld [vmem:[%s4] sm:$0x1]
    %v315 = vlaneseq
    %v316 = vshrl.u32 %v315, 7
    %v317 = vsub.s32 0, %v316
    %v318 = vrot.slane %v313, %v317
    %v322 = vcombine.high %v183, %v183
    %v324 = vunpack.c.l.s4 1983009808
    %v325 = vunpack.c.0.s8 %v324
    %v326 = vlaneseq
    %v327 = vshrl.u32 %v326, 7
    %v328 = vsub.s32 %v325, %v327
    %v329 = vrot.slane %v183, %v328
    %v331 = vunpack.c.l.s4 1983009808
    %v332 = vunpack.c.0.s8 %v331
    %v333 = vlaneseq
    %v334 = vshrl.u32 %v333, 7
    %v335 = vsub.s32 %v332, %v334
    %v336 = vrot.slane %v322, %v335
    %v337 = vcombine.high %v329, %v329
    %v338 = vcombine.high %v336, %v336
    %v339 = vcombine.high %v184, %v184
    %v341 = vunpack.c.l.s4 1983009808
    %v342 = vunpack.c.0.s8 %v341
    %v343 = vlaneseq
    %v344 = vshrl.u32 %v343, 7
    %v345 = vsub.s32 %v342, %v344
    %v346 = vrot.slane %v184, %v345
    %v348 = vunpack.c.l.s4 1983009808
    %v349 = vunpack.c.0.s8 %v348
    %v350 = vlaneseq
    %v351 = vshrl.u32 %v350, 7
    %v352 = vsub.s32 %v349, %v351
    %v353 = vrot.slane %v339, %v352
    %v354 = vcombine.high %v346, %v346
    %v355 = vcombine.high %v353, %v353
    %364 = vmatprep.subr.mxu0 0.0
    %365 = vmatpush1.msra.mxu0 %v200
    %366 = vmatprep.subr.mxu0 0.0
    %367 = vmatpush1.msra.mxu0 %v199
    %368 = vmatprep.subr.mxu0 0.0
    %369 = vmatpush1.msra.mxu0 %v198
    %370 = vmatprep.subr.mxu0 0.0
    %371 = vmatpush1.msra.mxu0 %v197
    %372 = vmatprep.subr.mxu0 0.0
    %373 = vmatpush1.msra.mxu0 %v196
    %374 = vmatprep.subr.mxu0 0.0
    %375 = vmatpush1.msra.mxu0 %v195
    %376 = vmatprep.subr.mxu0 0.0
    %377 = vmatpush1.msra.mxu0 %v194
    %378 = vmatprep.subr.mxu0 0.0
    %379 = vmatpush1.msra.mxu0 %v193
    %380 = vmatprep.subr.mxu0 0.0
    %381 = vmatpush1.msra.mxu0 %v192
    %382 = vmatprep.subr.mxu0 0.0
    %383 = vmatpush1.msra.mxu0 %v191
    %384 = vmatprep.subr.mxu0 0.0
    %385 = vmatpush1.msra.mxu0 %v190
    %386 = vmatprep.subr.mxu0 0.0
    %387 = vmatpush1.msra.mxu0 %v189
    %388 = vmatprep.subr.mxu0 0.0
    %389 = vmatpush1.msra.mxu0 %v188
    %390 = vmatprep.subr.mxu0 0.0
    %391 = vmatpush1.msra.mxu0 %v187
    %392 = vmatprep.subr.mxu0 0.0
    %393 = vmatpush1.msra.mxu0 %v186
    %394 = vmatprep.subr.mxu0 0.0
    %395 = vmatpush1.msra.mxu0 %v185
    %396 = vmatprep.subr.mxu0 0.0
    %397 = vmatpush2.msra.mxu0 %v216
    %398 = vmatprep.subr.mxu0 0.0
    %399 = vmatpush2.msra.mxu0 %v215
    %400 = vmatprep.subr.mxu0 0.0
    %401 = vmatpush2.msra.mxu0 %v214
    %402 = vmatprep.subr.mxu0 0.0
    %403 = vmatpush2.msra.mxu0 %v213
    %404 = vmatprep.subr.mxu0 0.0
    %405 = vmatpush2.msra.mxu0 %v212
    %406 = vmatprep.subr.mxu0 0.0
    %407 = vmatpush2.msra.mxu0 %v211
    %408 = vmatprep.subr.mxu0 0.0
    %409 = vmatpush2.msra.mxu0 %v210
    %410 = vmatprep.subr.mxu0 0.0
    %411 = vmatpush2.msra.mxu0 %v209
    %412 = vmatprep.subr.mxu0 0.0
    %413 = vmatpush2.msra.mxu0 %v208
    %414 = vmatprep.subr.mxu0 0.0
    %415 = vmatpush2.msra.mxu0 %v207
    %416 = vmatprep.subr.mxu0 0.0
    %417 = vmatpush2.msra.mxu0 %v206
    %418 = vmatprep.subr.mxu0 0.0
    %419 = vmatpush2.msra.mxu0 %v205
    %420 = vmatprep.subr.mxu0 0.0
    %421 = vmatpush2.msra.mxu0 %v204
    %422 = vmatprep.subr.mxu0 0.0
    %423 = vmatpush2.msra.mxu0 %v203
    %424 = vmatprep.subr.mxu0 0.0
    %425 = vmatpush2.msra.mxu0 %v202
    %426 = vmatprep.subr.mxu0 0.0
    %427 = vmatpush2.msra.mxu0 %v201
    %428 = vmatprep.mubr.f32.mxu0 %v337
    %429 = vmatmul.mubr.f32.gmra.mxu0 %v329
    %v430 = vpop.f32.mrf.mxu0
    %v431 = vadd.f32 %v318, %v430
    %v432 = vpop.f32.mrf.mxu0
    %433 = vdwg.mxu0
    %434 = vmatprep.subr.mxu0 0.0
    %435 = vmatpush1.msra.mxu0 %v232
    %436 = vmatprep.subr.mxu0 0.0
    %437 = vmatpush1.msra.mxu0 %v231
    %438 = vmatprep.subr.mxu0 0.0
    %439 = vmatpush1.msra.mxu0 %v230
    %440 = vmatprep.subr.mxu0 0.0
    %441 = vmatpush1.msra.mxu0 %v229
    %442 = vmatprep.subr.mxu0 0.0
    %443 = vmatpush1.msra.mxu0 %v228
    %444 = vmatprep.subr.mxu0 0.0
    %445 = vmatpush1.msra.mxu0 %v227
    %446 = vmatprep.subr.mxu0 0.0
    %447 = vmatpush1.msra.mxu0 %v226
    %448 = vmatprep.subr.mxu0 0.0
    %449 = vmatpush1.msra.mxu0 %v225
    %450 = vmatprep.subr.mxu0 0.0
    %451 = vmatpush1.msra.mxu0 %v224
    %452 = vmatprep.subr.mxu0 0.0
    %453 = vmatpush1.msra.mxu0 %v223
    %454 = vmatprep.subr.mxu0 0.0
    %455 = vmatpush1.msra.mxu0 %v222
    %456 = vmatprep.subr.mxu0 0.0
    %457 = vmatpush1.msra.mxu0 %v221
    %458 = vmatprep.subr.mxu0 0.0
    %459 = vmatpush1.msra.mxu0 %v220
    %460 = vmatprep.subr.mxu0 0.0
    %461 = vmatpush1.msra.mxu0 %v219
    %462 = vmatprep.subr.mxu0 0.0
    %463 = vmatpush1.msra.mxu0 %v218
    %464 = vmatprep.subr.mxu0 0.0
    %465 = vmatpush1.msra.mxu0 %v217
    %466 = vmatprep.subr.mxu0 0.0
    %467 = vmatpush2.msra.mxu0 %v248
    %468 = vmatprep.subr.mxu0 0.0
    %469 = vmatpush2.msra.mxu0 %v247
    %470 = vmatprep.subr.mxu0 0.0
    %471 = vmatpush2.msra.mxu0 %v246
    %472 = vmatprep.subr.mxu0 0.0
    %473 = vmatpush2.msra.mxu0 %v245
    %474 = vmatprep.subr.mxu0 0.0
    %475 = vmatpush2.msra.mxu0 %v244
    %476 = vmatprep.subr.mxu0 0.0
    %477 = vmatpush2.msra.mxu0 %v243
    %478 = vmatprep.subr.mxu0 0.0
    %479 = vmatpush2.msra.mxu0 %v242
    %480 = vmatprep.subr.mxu0 0.0
    %481 = vmatpush2.msra.mxu0 %v241
    %482 = vmatprep.subr.mxu0 0.0
    %483 = vmatpush2.msra.mxu0 %v240
    %484 = vmatprep.subr.mxu0 0.0
    %485 = vmatpush2.msra.mxu0 %v239
    %486 = vmatprep.subr.mxu0 0.0
    %487 = vmatpush2.msra.mxu0 %v238
    %488 = vmatprep.subr.mxu0 0.0
    %489 = vmatpush2.msra.mxu0 %v237
    %490 = vmatprep.subr.mxu0 0.0
    %491 = vmatpush2.msra.mxu0 %v236
    %492 = vmatprep.subr.mxu0 0.0
    %493 = vmatpush2.msra.mxu0 %v235
    %494 = vmatprep.subr.mxu0 0.0
    %495 = vmatpush2.msra.mxu0 %v234
    %496 = vmatprep.subr.mxu0 0.0
    %497 = vmatpush2.msra.mxu0 %v233
    %498 = vmatprep.mubr.f32.mxu0 %v338
    %499 = vmatmul.mubr.f32.gmra.mxu0 %v336
    %v500 = vpop.f32.mrf.mxu0
    %v501 = vadd.f32 %v431, %v500
    %v502 = vpop.f32.mrf.mxu0
    %503 = vdwg.mxu0
    %504 = vmatprep.subr.mxu0 0.0
    %505 = vmatpush1.msra.mxu0 %v264
    %506 = vmatprep.subr.mxu0 0.0
    %507 = vmatpush1.msra.mxu0 %v263
    %508 = vmatprep.subr.mxu0 0.0
    %509 = vmatpush1.msra.mxu0 %v262
    %510 = vmatprep.subr.mxu0 0.0
    %511 = vmatpush1.msra.mxu0 %v261
    %512 = vmatprep.subr.mxu0 0.0
    %513 = vmatpush1.msra.mxu0 %v260
    %514 = vmatprep.subr.mxu0 0.0
    %515 = vmatpush1.msra.mxu0 %v259
    %516 = vmatprep.subr.mxu0 0.0
    %517 = vmatpush1.msra.mxu0 %v258
    %518 = vmatprep.subr.mxu0 0.0
    %519 = vmatpush1.msra.mxu0 %v257
    %520 = vmatprep.subr.mxu0 0.0
    %521 = vmatpush1.msra.mxu0 %v256
    %522 = vmatprep.subr.mxu0 0.0
    %523 = vmatpush1.msra.mxu0 %v255
    %524 = vmatprep.subr.mxu0 0.0
    %525 = vmatpush1.msra.mxu0 %v254
    %526 = vmatprep.subr.mxu0 0.0
    %527 = vmatpush1.msra.mxu0 %v253
    %528 = vmatprep.subr.mxu0 0.0
    %529 = vmatpush1.msra.mxu0 %v252
    %530 = vmatprep.subr.mxu0 0.0
    %531 = vmatpush1.msra.mxu0 %v251
    %532 = vmatprep.subr.mxu0 0.0
    %533 = vmatpush1.msra.mxu0 %v250
    %534 = vmatprep.subr.mxu0 0.0
    %535 = vmatpush1.msra.mxu0 %v249
    %536 = vmatprep.subr.mxu0 0.0
    %537 = vmatpush2.msra.mxu0 %v280
    %538 = vmatprep.subr.mxu0 0.0
    %539 = vmatpush2.msra.mxu0 %v279
    %540 = vmatprep.subr.mxu0 0.0
    %541 = vmatpush2.msra.mxu0 %v278
    %542 = vmatprep.subr.mxu0 0.0
    %543 = vmatpush2.msra.mxu0 %v277
    %544 = vmatprep.subr.mxu0 0.0
    %545 = vmatpush2.msra.mxu0 %v276
    %546 = vmatprep.subr.mxu0 0.0
    %547 = vmatpush2.msra.mxu0 %v275
    %548 = vmatprep.subr.mxu0 0.0
    %549 = vmatpush2.msra.mxu0 %v274
    %550 = vmatprep.subr.mxu0 0.0
    %551 = vmatpush2.msra.mxu0 %v273
    %552 = vmatprep.subr.mxu0 0.0
    %553 = vmatpush2.msra.mxu0 %v272
    %554 = vmatprep.subr.mxu0 0.0
    %555 = vmatpush2.msra.mxu0 %v271
    %556 = vmatprep.subr.mxu0 0.0
    %557 = vmatpush2.msra.mxu0 %v270
    %558 = vmatprep.subr.mxu0 0.0
    %559 = vmatpush2.msra.mxu0 %v269
    %560 = vmatprep.subr.mxu0 0.0
    %561 = vmatpush2.msra.mxu0 %v268
    %562 = vmatprep.subr.mxu0 0.0
    %563 = vmatpush2.msra.mxu0 %v267
    %564 = vmatprep.subr.mxu0 0.0
    %565 = vmatpush2.msra.mxu0 %v266
    %566 = vmatprep.subr.mxu0 0.0
    %567 = vmatpush2.msra.mxu0 %v265
    %568 = vmatprep.mubr.f32.mxu0 %v354
    %569 = vmatmul.mubr.f32.gmra.mxu0 %v346
    %v570 = vpop.f32.mrf.mxu0
    %v571 = vadd.f32 %v501, %v570
    %v572 = vpop.f32.mrf.mxu0
    %573 = vdwg.mxu0
    %574 = vmatprep.subr.mxu0 0.0
    %575 = vmatpush1.msra.mxu0 %v296
    %576 = vmatprep.subr.mxu0 0.0
    %577 = vmatpush1.msra.mxu0 %v295
    %578 = vmatprep.subr.mxu0 0.0
    %579 = vmatpush1.msra.mxu0 %v294
    %580 = vmatprep.subr.mxu0 0.0
    %581 = vmatpush1.msra.mxu0 %v293
    %582 = vmatprep.subr.mxu0 0.0
    %583 = vmatpush1.msra.mxu0 %v292
    %584 = vmatprep.subr.mxu0 0.0
    %585 = vmatpush1.msra.mxu0 %v291
    %586 = vmatprep.subr.mxu0 0.0
    %587 = vmatpush1.msra.mxu0 %v290
    %588 = vmatprep.subr.mxu0 0.0
    %589 = vmatpush1.msra.mxu0 %v289
    %590 = vmatprep.subr.mxu0 0.0
    %591 = vmatpush1.msra.mxu0 %v288
    %592 = vmatprep.subr.mxu0 0.0
    %593 = vmatpush1.msra.mxu0 %v287
    %594 = vmatprep.subr.mxu0 0.0
    %595 = vmatpush1.msra.mxu0 %v286
    %596 = vmatprep.subr.mxu0 0.0
    %597 = vmatpush1.msra.mxu0 %v285
    %598 = vmatprep.subr.mxu0 0.0
    %599 = vmatpush1.msra.mxu0 %v284
    %600 = vmatprep.subr.mxu0 0.0
    %601 = vmatpush1.msra.mxu0 %v283
    %602 = vmatprep.subr.mxu0 0.0
    %603 = vmatpush1.msra.mxu0 %v282
    %604 = vmatprep.subr.mxu0 0.0
    %605 = vmatpush1.msra.mxu0 %v281
    %606 = vmatprep.subr.mxu0 0.0
    %607 = vmatpush2.msra.mxu0 %v312
    %608 = vmatprep.subr.mxu0 0.0
    %609 = vmatpush2.msra.mxu0 %v311
    %610 = vmatprep.subr.mxu0 0.0
    %611 = vmatpush2.msra.mxu0 %v310
    %612 = vmatprep.subr.mxu0 0.0
    %613 = vmatpush2.msra.mxu0 %v309
    %614 = vmatprep.subr.mxu0 0.0
    %615 = vmatpush2.msra.mxu0 %v308
    %616 = vmatprep.subr.mxu0 0.0
    %617 = vmatpush2.msra.mxu0 %v307
    %618 = vmatprep.subr.mxu0 0.0
    %619 = vmatpush2.msra.mxu0 %v306
    %620 = vmatprep.subr.mxu0 0.0
    %621 = vmatpush2.msra.mxu0 %v305
    %622 = vmatprep.subr.mxu0 0.0
    %623 = vmatpush2.msra.mxu0 %v304
    %624 = vmatprep.subr.mxu0 0.0
    %625 = vmatpush2.msra.mxu0 %v303
    %626 = vmatprep.subr.mxu0 0.0
    %627 = vmatpush2.msra.mxu0 %v302
    %628 = vmatprep.subr.mxu0 0.0
    %629 = vmatpush2.msra.mxu0 %v301
    %630 = vmatprep.subr.mxu0 0.0
    %631 = vmatpush2.msra.mxu0 %v300
    %632 = vmatprep.subr.mxu0 0.0
    %633 = vmatpush2.msra.mxu0 %v299
    %634 = vmatprep.subr.mxu0 0.0
    %635 = vmatpush2.msra.mxu0 %v298
    %636 = vmatprep.subr.mxu0 0.0
    %637 = vmatpush2.msra.mxu0 %v297
    %638 = vmatprep.mubr.f32.mxu0 %v355
    %639 = vmatmul.mubr.f32.gmra.mxu0 %v353
    %v640 = vpop.f32.mrf.mxu0
    %v641 = vadd.f32 %v571, %v640
    %v642 = vpop.f32.mrf.mxu0
    %643 = vdwg.mxu0
    %644 = vst [vmem:[#allocation2] sm:$0x3] %v641
    %v645 = vld [vmem:[%s5] sm:$0xff]
    %v646 = vld [vmem:[%s5 + $0x8] sm:$0xff]
    %v647 = vld [vmem:[%s5 + $0x10] sm:$0xff]
    %v648 = vld [vmem:[%s5 + $0x18] sm:$0xff]
    %v649 = vld [vmem:[%s5 + $0x20] sm:$0xff]
    %v650 = vld [vmem:[%s5 + $0x28] sm:$0xff]
    %v651 = vld [vmem:[%s5 + $0x30] sm:$0xff]
    %v652 = vld [vmem:[%s5 + $0x38] sm:$0xff]
    %v653 = vld [vmem:[%s5 + $0x40] sm:$0xff]
    %v654 = vld [vmem:[%s5 + $0x48] sm:$0xff]
    %v655 = vld [vmem:[%s5 + $0x50] sm:$0xff]
    %v656 = vld [vmem:[%s5 + $0x58] sm:$0xff]
    %v657 = vld [vmem:[%s5 + $0x60] sm:$0xff]
    %v658 = vld [vmem:[%s5 + $0x68] sm:$0xff]
    %v659 = vld [vmem:[%s5 + $0x70] sm:$0xff]
    %v660 = vld [vmem:[%s5 + $0x78] sm:$0xff]
    %v661 = vld [vmem:[%s5 + $0x80] sm:$0xff]
    %v662 = vld [vmem:[%s5 + $0x88] sm:$0xff]
    %v663 = vld [vmem:[%s5 + $0x90] sm:$0xff]
    %v664 = vld [vmem:[%s5 + $0x98] sm:$0xff]
    %v665 = vld [vmem:[%s5 + $0xa0] sm:$0xff]
    %v666 = vld [vmem:[%s5 + $0xa8] sm:$0xff]
    %v667 = vld [vmem:[%s5 + $0xb0] sm:$0xff]
    %v668 = vld [vmem:[%s5 + $0xb8] sm:$0xff]
    %v669 = vld [vmem:[%s5 + $0xc0] sm:$0xff]
    %v670 = vld [vmem:[%s5 + $0xc8] sm:$0xff]
    %v671 = vld [vmem:[%s5 + $0xd0] sm:$0xff]
    %v672 = vld [vmem:[%s5 + $0xd8] sm:$0xff]
    %v673 = vld [vmem:[%s5 + $0xe0] sm:$0xff]
    %v674 = vld [vmem:[%s5 + $0xe8] sm:$0xff]
    %v675 = vld [vmem:[%s5 + $0xf0] sm:$0xff]
    %v676 = vld [vmem:[%s5 + $0xf8] sm:$0xff]
    %v677 = vld [vmem:[%s5 + $0x100] sm:$0xff]
    %v678 = vld [vmem:[%s5 + $0x108] sm:$0xff]
    %v679 = vld [vmem:[%s5 + $0x110] sm:$0xff]
    %v680 = vld [vmem:[%s5 + $0x118] sm:$0xff]
    %v681 = vld [vmem:[%s5 + $0x120] sm:$0xff]
    %v682 = vld [vmem:[%s5 + $0x128] sm:$0xff]
    %v683 = vld [vmem:[%s5 + $0x130] sm:$0xff]
    %v684 = vld [vmem:[%s5 + $0x138] sm:$0xff]
    %v685 = vld [vmem:[%s5 + $0x140] sm:$0xff]
    %v686 = vld [vmem:[%s5 + $0x148] sm:$0xff]
    %v687 = vld [vmem:[%s5 + $0x150] sm:$0xff]
    %v688 = vld [vmem:[%s5 + $0x158] sm:$0xff]
    %v689 = vld [vmem:[%s5 + $0x160] sm:$0xff]
    %v690 = vld [vmem:[%s5 + $0x168] sm:$0xff]
    %v691 = vld [vmem:[%s5 + $0x170] sm:$0xff]
    %v692 = vld [vmem:[%s5 + $0x178] sm:$0xff]
    %v693 = vld [vmem:[%s5 + $0x180] sm:$0xff]
    %v694 = vld [vmem:[%s5 + $0x188] sm:$0xff]
    %v695 = vld [vmem:[%s5 + $0x190] sm:$0xff]
    %v696 = vld [vmem:[%s5 + $0x198] sm:$0xff]
    %v697 = vld [vmem:[%s5 + $0x1a0] sm:$0xff]
    %v698 = vld [vmem:[%s5 + $0x1a8] sm:$0xff]
    %v699 = vld [vmem:[%s5 + $0x1b0] sm:$0xff]
    %v700 = vld [vmem:[%s5 + $0x1b8] sm:$0xff]
    %v701 = vld [vmem:[%s5 + $0x1c0] sm:$0xff]
    %v702 = vld [vmem:[%s5 + $0x1c8] sm:$0xff]
    %v703 = vld [vmem:[%s5 + $0x1d0] sm:$0xff]
    %v704 = vld [vmem:[%s5 + $0x1d8] sm:$0xff]
    %v705 = vld [vmem:[%s5 + $0x1e0] sm:$0xff]
    %v706 = vld [vmem:[%s5 + $0x1e8] sm:$0xff]
    %v707 = vld [vmem:[%s5 + $0x1f0] sm:$0xff]
    %v708 = vld [vmem:[%s5 + $0x1f8] sm:$0xff]
    %v709 = vld [vmem:[%s5 + $0x200] sm:$0xff]
    %v710 = vld [vmem:[%s5 + $0x208] sm:$0xff]
    %v711 = vld [vmem:[%s5 + $0x210] sm:$0xff]
    %v712 = vld [vmem:[%s5 + $0x218] sm:$0xff]
    %v713 = vld [vmem:[%s5 + $0x220] sm:$0xff]
    %v714 = vld [vmem:[%s5 + $0x228] sm:$0xff]
    %v715 = vld [vmem:[%s5 + $0x230] sm:$0xff]
    %v716 = vld [vmem:[%s5 + $0x238] sm:$0xff]
    %v717 = vld [vmem:[%s5 + $0x240] sm:$0xff]
    %v718 = vld [vmem:[%s5 + $0x248] sm:$0xff]
    %v719 = vld [vmem:[%s5 + $0x250] sm:$0xff]
    %v720 = vld [vmem:[%s5 + $0x258] sm:$0xff]
    %v721 = vld [vmem:[%s5 + $0x260] sm:$0xff]
    %v722 = vld [vmem:[%s5 + $0x268] sm:$0xff]
    %v723 = vld [vmem:[%s5 + $0x270] sm:$0xff]
    %v724 = vld [vmem:[%s5 + $0x278] sm:$0xff]
    %v725 = vld [vmem:[%s5 + $0x280] sm:$0xff]
    %v726 = vld [vmem:[%s5 + $0x288] sm:$0xff]
    %v727 = vld [vmem:[%s5 + $0x290] sm:$0xff]
    %v728 = vld [vmem:[%s5 + $0x298] sm:$0xff]
    %v729 = vld [vmem:[%s5 + $0x2a0] sm:$0xff]
    %v730 = vld [vmem:[%s5 + $0x2a8] sm:$0xff]
    %v731 = vld [vmem:[%s5 + $0x2b0] sm:$0xff]
    %v732 = vld [vmem:[%s5 + $0x2b8] sm:$0xff]
    %v733 = vld [vmem:[%s5 + $0x2c0] sm:$0xff]
    %v734 = vld [vmem:[%s5 + $0x2c8] sm:$0xff]
    %v735 = vld [vmem:[%s5 + $0x2d0] sm:$0xff]
    %v736 = vld [vmem:[%s5 + $0x2d8] sm:$0xff]
    %v737 = vld [vmem:[%s5 + $0x2e0] sm:$0xff]
    %v738 = vld [vmem:[%s5 + $0x2e8] sm:$0xff]
    %v739 = vld [vmem:[%s5 + $0x2f0] sm:$0xff]
    %v740 = vld [vmem:[%s5 + $0x2f8] sm:$0xff]
    %v741 = vld [vmem:[%s5 + $0x300] sm:$0xff]
    %v742 = vld [vmem:[%s5 + $0x308] sm:$0xff]
    %v743 = vld [vmem:[%s5 + $0x310] sm:$0xff]
    %v744 = vld [vmem:[%s5 + $0x318] sm:$0xff]
    %v745 = vld [vmem:[%s5 + $0x320] sm:$0xff]
    %v746 = vld [vmem:[%s5 + $0x328] sm:$0xff]
    %v747 = vld [vmem:[%s5 + $0x330] sm:$0xff]
    %v748 = vld [vmem:[%s5 + $0x338] sm:$0xff]
    %v749 = vld [vmem:[%s5 + $0x340] sm:$0xff]
    %v750 = vld [vmem:[%s5 + $0x348] sm:$0xff]
    %v751 = vld [vmem:[%s5 + $0x350] sm:$0xff]
    %v752 = vld [vmem:[%s5 + $0x358] sm:$0xff]
    %v753 = vld [vmem:[%s5 + $0x360] sm:$0xff]
    %v754 = vld [vmem:[%s5 + $0x368] sm:$0xff]
    %v755 = vld [vmem:[%s5 + $0x370] sm:$0xff]
    %v756 = vld [vmem:[%s5 + $0x378] sm:$0xff]
    %v757 = vld [vmem:[%s5 + $0x380] sm:$0xff]
    %v758 = vld [vmem:[%s5 + $0x388] sm:$0xff]
    %v759 = vld [vmem:[%s5 + $0x390] sm:$0xff]
    %v760 = vld [vmem:[%s5 + $0x398] sm:$0xff]
    %v761 = vld [vmem:[%s5 + $0x3a0] sm:$0xff]
    %v762 = vld [vmem:[%s5 + $0x3a8] sm:$0xff]
    %v763 = vld [vmem:[%s5 + $0x3b0] sm:$0xff]
    %v764 = vld [vmem:[%s5 + $0x3b8] sm:$0xff]
    %v765 = vld [vmem:[%s5 + $0x3c0] sm:$0xff]
    %v766 = vld [vmem:[%s5 + $0x3c8] sm:$0xff]
    %v767 = vld [vmem:[%s5 + $0x3d0] sm:$0xff]
    %v768 = vld [vmem:[%s5 + $0x3d8] sm:$0xff]
    %v769 = vld [vmem:[%s5 + $0x3e0] sm:$0xff]
    %v770 = vld [vmem:[%s5 + $0x3e8] sm:$0xff]
    %v771 = vld [vmem:[%s5 + $0x3f0] sm:$0xff]
    %v772 = vld [vmem:[%s5 + $0x3f8] sm:$0xff]
    %v773 = vld [vmem:[%s6] sm:$0x1]
    %v775 = vlaneseq
    %v776 = vshrl.u32 %v775, 7
    %v777 = vsub.s32 0, %v776
    %v778 = vrot.slane %v773, %v777
    %v782 = vcombine.high %v39, %v39
    %v784 = vunpack.c.l.s4 1983009808
    %v785 = vunpack.c.0.s8 %v784
    %v786 = vlaneseq
    %v787 = vshrl.u32 %v786, 7
    %v788 = vsub.s32 %v785, %v787
    %v789 = vrot.slane %v39, %v788
    %v791 = vunpack.c.l.s4 1983009808
    %v792 = vunpack.c.0.s8 %v791
    %v793 = vlaneseq
    %v794 = vshrl.u32 %v793, 7
    %v795 = vsub.s32 %v792, %v794
    %v796 = vrot.slane %v782, %v795
    %v797 = vcombine.high %v789, %v789
    %v798 = vcombine.high %v796, %v796
    %v799 = vcombine.high %v40, %v40
    %v801 = vunpack.c.l.s4 1983009808
    %v802 = vunpack.c.0.s8 %v801
    %v803 = vlaneseq
    %v804 = vshrl.u32 %v803, 7
    %v805 = vsub.s32 %v802, %v804
    %v806 = vrot.slane %v40, %v805
    %v808 = vunpack.c.l.s4 1983009808
    %v809 = vunpack.c.0.s8 %v808
    %v810 = vlaneseq
    %v811 = vshrl.u32 %v810, 7
    %v812 = vsub.s32 %v809, %v811
    %v813 = vrot.slane %v799, %v812
    %v814 = vcombine.high %v806, %v806
    %v815 = vcombine.high %v813, %v813
    %824 = vmatprep.subr.mxu0 0.0
    %825 = vmatpush1.msra.mxu0 %v660
    %826 = vmatprep.subr.mxu0 0.0
    %827 = vmatpush1.msra.mxu0 %v659
    %828 = vmatprep.subr.mxu0 0.0
    %829 = vmatpush1.msra.mxu0 %v658
    %830 = vmatprep.subr.mxu0 0.0
    %831 = vmatpush1.msra.mxu0 %v657
    %832 = vmatprep.subr.mxu0 0.0
    %833 = vmatpush1.msra.mxu0 %v656
    %834 = vmatprep.subr.mxu0 0.0
    %835 = vmatpush1.msra.mxu0 %v655
    %836 = vmatprep.subr.mxu0 0.0
    %837 = vmatpush1.msra.mxu0 %v654
    %838 = vmatprep.subr.mxu0 0.0
    %839 = vmatpush1.msra.mxu0 %v653
    %840 = vmatprep.subr.mxu0 0.0
    %841 = vmatpush1.msra.mxu0 %v652
    %842 = vmatprep.subr.mxu0 0.0
    %843 = vmatpush1.msra.mxu0 %v651
    %844 = vmatprep.subr.mxu0 0.0
    %845 = vmatpush1.msra.mxu0 %v650
    %846 = vmatprep.subr.mxu0 0.0
    %847 = vmatpush1.msra.mxu0 %v649
    %848 = vmatprep.subr.mxu0 0.0
    %849 = vmatpush1.msra.mxu0 %v648
    %850 = vmatprep.subr.mxu0 0.0
    %851 = vmatpush1.msra.mxu0 %v647
    %852 = vmatprep.subr.mxu0 0.0
    %853 = vmatpush1.msra.mxu0 %v646
    %854 = vmatprep.subr.mxu0 0.0
    %855 = vmatpush1.msra.mxu0 %v645
    %856 = vmatprep.subr.mxu0 0.0
    %857 = vmatpush2.msra.mxu0 %v676
    %858 = vmatprep.subr.mxu0 0.0
    %859 = vmatpush2.msra.mxu0 %v675
    %860 = vmatprep.subr.mxu0 0.0
    %861 = vmatpush2.msra.mxu0 %v674
    %862 = vmatprep.subr.mxu0 0.0
    %863 = vmatpush2.msra.mxu0 %v673
    %864 = vmatprep.subr.mxu0 0.0
    %865 = vmatpush2.msra.mxu0 %v672
    %866 = vmatprep.subr.mxu0 0.0
    %867 = vmatpush2.msra.mxu0 %v671
    %868 = vmatprep.subr.mxu0 0.0
    %869 = vmatpush2.msra.mxu0 %v670
    %870 = vmatprep.subr.mxu0 0.0
    %871 = vmatpush2.msra.mxu0 %v669
    %872 = vmatprep.subr.mxu0 0.0
    %873 = vmatpush2.msra.mxu0 %v668
    %874 = vmatprep.subr.mxu0 0.0
    %875 = vmatpush2.msra.mxu0 %v667
    %876 = vmatprep.subr.mxu0 0.0
    %877 = vmatpush2.msra.mxu0 %v666
    %878 = vmatprep.subr.mxu0 0.0
    %879 = vmatpush2.msra.mxu0 %v665
    %880 = vmatprep.subr.mxu0 0.0
    %881 = vmatpush2.msra.mxu0 %v664
    %882 = vmatprep.subr.mxu0 0.0
    %883 = vmatpush2.msra.mxu0 %v663
    %884 = vmatprep.subr.mxu0 0.0
    %885 = vmatpush2.msra.mxu0 %v662
    %886 = vmatprep.subr.mxu0 0.0
    %887 = vmatpush2.msra.mxu0 %v661
    %888 = vmatprep.mubr.f32.mxu0 %v797
    %889 = vmatmul.mubr.f32.gmra.mxu0 %v789
    %v890 = vpop.f32.mrf.mxu0
    %v891 = vadd.f32 %v778, %v890
    %v892 = vpop.f32.mrf.mxu0
    %893 = vdwg.mxu0
    %894 = vmatprep.subr.mxu0 0.0
    %895 = vmatpush1.msra.mxu0 %v692
    %896 = vmatprep.subr.mxu0 0.0
    %897 = vmatpush1.msra.mxu0 %v691
    %898 = vmatprep.subr.mxu0 0.0
    %899 = vmatpush1.msra.mxu0 %v690
    %900 = vmatprep.subr.mxu0 0.0
    %901 = vmatpush1.msra.mxu0 %v689
    %902 = vmatprep.subr.mxu0 0.0
    %903 = vmatpush1.msra.mxu0 %v688
    %904 = vmatprep.subr.mxu0 0.0
    %905 = vmatpush1.msra.mxu0 %v687
    %906 = vmatprep.subr.mxu0 0.0
    %907 = vmatpush1.msra.mxu0 %v686
    %908 = vmatprep.subr.mxu0 0.0
    %909 = vmatpush1.msra.mxu0 %v685
    %910 = vmatprep.subr.mxu0 0.0
    %911 = vmatpush1.msra.mxu0 %v684
    %912 = vmatprep.subr.mxu0 0.0
    %913 = vmatpush1.msra.mxu0 %v683
    %914 = vmatprep.subr.mxu0 0.0
    %915 = vmatpush1.msra.mxu0 %v682
    %916 = vmatprep.subr.mxu0 0.0
    %917 = vmatpush1.msra.mxu0 %v681
    %918 = vmatprep.subr.mxu0 0.0
    %919 = vmatpush1.msra.mxu0 %v680
    %920 = vmatprep.subr.mxu0 0.0
    %921 = vmatpush1.msra.mxu0 %v679
    %922 = vmatprep.subr.mxu0 0.0
    %923 = vmatpush1.msra.mxu0 %v678
    %924 = vmatprep.subr.mxu0 0.0
    %925 = vmatpush1.msra.mxu0 %v677
    %926 = vmatprep.subr.mxu0 0.0
    %927 = vmatpush2.msra.mxu0 %v708
    %928 = vmatprep.subr.mxu0 0.0
    %929 = vmatpush2.msra.mxu0 %v707
    %930 = vmatprep.subr.mxu0 0.0
    %931 = vmatpush2.msra.mxu0 %v706
    %932 = vmatprep.subr.mxu0 0.0
    %933 = vmatpush2.msra.mxu0 %v705
    %934 = vmatprep.subr.mxu0 0.0
    %935 = vmatpush2.msra.mxu0 %v704
    %936 = vmatprep.subr.mxu0 0.0
    %937 = vmatpush2.msra.mxu0 %v703
    %938 = vmatprep.subr.mxu0 0.0
    %939 = vmatpush2.msra.mxu0 %v702
    %940 = vmatprep.subr.mxu0 0.0
    %941 = vmatpush2.msra.mxu0 %v701
    %942 = vmatprep.subr.mxu0 0.0
    %943 = vmatpush2.msra.mxu0 %v700
    %944 = vmatprep.subr.mxu0 0.0
    %945 = vmatpush2.msra.mxu0 %v699
    %946 = vmatprep.subr.mxu0 0.0
    %947 = vmatpush2.msra.mxu0 %v698
    %948 = vmatprep.subr.mxu0 0.0
    %949 = vmatpush2.msra.mxu0 %v697
    %950 = vmatprep.subr.mxu0 0.0
    %951 = vmatpush2.msra.mxu0 %v696
    %952 = vmatprep.subr.mxu0 0.0
    %953 = vmatpush2.msra.mxu0 %v695
    %954 = vmatprep.subr.mxu0 0.0
    %955 = vmatpush2.msra.mxu0 %v694
    %956 = vmatprep.subr.mxu0 0.0
    %957 = vmatpush2.msra.mxu0 %v693
    %958 = vmatprep.mubr.f32.mxu0 %v798
    %959 = vmatmul.mubr.f32.gmra.mxu0 %v796
    %v960 = vpop.f32.mrf.mxu0
    %v961 = vadd.f32 %v891, %v960
    %v962 = vpop.f32.mrf.mxu0
    %963 = vdwg.mxu0
    %964 = vmatprep.subr.mxu0 0.0
    %965 = vmatpush1.msra.mxu0 %v724
    %966 = vmatprep.subr.mxu0 0.0
    %967 = vmatpush1.msra.mxu0 %v723
    %968 = vmatprep.subr.mxu0 0.0
    %969 = vmatpush1.msra.mxu0 %v722
    %970 = vmatprep.subr.mxu0 0.0
    %971 = vmatpush1.msra.mxu0 %v721
    %972 = vmatprep.subr.mxu0 0.0
    %973 = vmatpush1.msra.mxu0 %v720
    %974 = vmatprep.subr.mxu0 0.0
    %975 = vmatpush1.msra.mxu0 %v719
    %976 = vmatprep.subr.mxu0 0.0
    %977 = vmatpush1.msra.mxu0 %v718
    %978 = vmatprep.subr.mxu0 0.0
    %979 = vmatpush1.msra.mxu0 %v717
    %980 = vmatprep.subr.mxu0 0.0
    %981 = vmatpush1.msra.mxu0 %v716
    %982 = vmatprep.subr.mxu0 0.0
    %983 = vmatpush1.msra.mxu0 %v715
    %984 = vmatprep.subr.mxu0 0.0
    %985 = vmatpush1.msra.mxu0 %v714
    %986 = vmatprep.subr.mxu0 0.0
    %987 = vmatpush1.msra.mxu0 %v713
    %988 = vmatprep.subr.mxu0 0.0
    %989 = vmatpush1.msra.mxu0 %v712
    %990 = vmatprep.subr.mxu0 0.0
    %991 = vmatpush1.msra.mxu0 %v711
    %992 = vmatprep.subr.mxu0 0.0
    %993 = vmatpush1.msra.mxu0 %v710
    %994 = vmatprep.subr.mxu0 0.0
    %995 = vmatpush1.msra.mxu0 %v709
    %996 = vmatprep.subr.mxu0 0.0
    %997 = vmatpush2.msra.mxu0 %v740
    %998 = vmatprep.subr.mxu0 0.0
    %999 = vmatpush2.msra.mxu0 %v739
    %1000 = vmatprep.subr.mxu0 0.0
    %1001 = vmatpush2.msra.mxu0 %v738
    %1002 = vmatprep.subr.mxu0 0.0
    %1003 = vmatpush2.msra.mxu0 %v737
    %1004 = vmatprep.subr.mxu0 0.0
    %1005 = vmatpush2.msra.mxu0 %v736
    %1006 = vmatprep.subr.mxu0 0.0
    %1007 = vmatpush2.msra.mxu0 %v735
    %1008 = vmatprep.subr.mxu0 0.0
    %1009 = vmatpush2.msra.mxu0 %v734
    %1010 = vmatprep.subr.mxu0 0.0
    %1011 = vmatpush2.msra.mxu0 %v733
    %1012 = vmatprep.subr.mxu0 0.0
    %1013 = vmatpush2.msra.mxu0 %v732
    %1014 = vmatprep.subr.mxu0 0.0
    %1015 = vmatpush2.msra.mxu0 %v731
    %1016 = vmatprep.subr.mxu0 0.0
    %1017 = vmatpush2.msra.mxu0 %v730
    %1018 = vmatprep.subr.mxu0 0.0
    %1019 = vmatpush2.msra.mxu0 %v729
    %1020 = vmatprep.subr.mxu0 0.0
    %1021 = vmatpush2.msra.mxu0 %v728
    %1022 = vmatprep.subr.mxu0 0.0
    %1023 = vmatpush2.msra.mxu0 %v727
    %1024 = vmatprep.subr.mxu0 0.0
    %1025 = vmatpush2.msra.mxu0 %v726
    %1026 = vmatprep.subr.mxu0 0.0
    %1027 = vmatpush2.msra.mxu0 %v725
    %1028 = vmatprep.mubr.f32.mxu0 %v814
    %1029 = vmatmul.mubr.f32.gmra.mxu0 %v806
    %v1030 = vpop.f32.mrf.mxu0
    %v1031 = vadd.f32 %v961, %v1030
    %v1032 = vpop.f32.mrf.mxu0
    %1033 = vdwg.mxu0
    %1034 = vmatprep.subr.mxu0 0.0
    %1035 = vmatpush1.msra.mxu0 %v756
    %1036 = vmatprep.subr.mxu0 0.0
    %1037 = vmatpush1.msra.mxu0 %v755
    %1038 = vmatprep.subr.mxu0 0.0
    %1039 = vmatpush1.msra.mxu0 %v754
    %1040 = vmatprep.subr.mxu0 0.0
    %1041 = vmatpush1.msra.mxu0 %v753
    %1042 = vmatprep.subr.mxu0 0.0
    %1043 = vmatpush1.msra.mxu0 %v752
    %1044 = vmatprep.subr.mxu0 0.0
    %1045 = vmatpush1.msra.mxu0 %v751
    %1046 = vmatprep.subr.mxu0 0.0
    %1047 = vmatpush1.msra.mxu0 %v750
    %1048 = vmatprep.subr.mxu0 0.0
    %1049 = vmatpush1.msra.mxu0 %v749
    %1050 = vmatprep.subr.mxu0 0.0
    %1051 = vmatpush1.msra.mxu0 %v748
    %1052 = vmatprep.subr.mxu0 0.0
    %1053 = vmatpush1.msra.mxu0 %v747
    %1054 = vmatprep.subr.mxu0 0.0
    %1055 = vmatpush1.msra.mxu0 %v746
    %1056 = vmatprep.subr.mxu0 0.0
    %1057 = vmatpush1.msra.mxu0 %v745
    %1058 = vmatprep.subr.mxu0 0.0
    %1059 = vmatpush1.msra.mxu0 %v744
    %1060 = vmatprep.subr.mxu0 0.0
    %1061 = vmatpush1.msra.mxu0 %v743
    %1062 = vmatprep.subr.mxu0 0.0
    %1063 = vmatpush1.msra.mxu0 %v742
    %1064 = vmatprep.subr.mxu0 0.0
    %1065 = vmatpush1.msra.mxu0 %v741
    %1066 = vmatprep.subr.mxu0 0.0
    %1067 = vmatpush2.msra.mxu0 %v772
    %1068 = vmatprep.subr.mxu0 0.0
    %1069 = vmatpush2.msra.mxu0 %v771
    %1070 = vmatprep.subr.mxu0 0.0
    %1071 = vmatpush2.msra.mxu0 %v770
    %1072 = vmatprep.subr.mxu0 0.0
    %1073 = vmatpush2.msra.mxu0 %v769
    %1074 = vmatprep.subr.mxu0 0.0
    %1075 = vmatpush2.msra.mxu0 %v768
    %1076 = vmatprep.subr.mxu0 0.0
    %1077 = vmatpush2.msra.mxu0 %v767
    %1078 = vmatprep.subr.mxu0 0.0
    %1079 = vmatpush2.msra.mxu0 %v766
    %1080 = vmatprep.subr.mxu0 0.0
    %1081 = vmatpush2.msra.mxu0 %v765
    %1082 = vmatprep.subr.mxu0 0.0
    %1083 = vmatpush2.msra.mxu0 %v764
    %1084 = vmatprep.subr.mxu0 0.0
    %1085 = vmatpush2.msra.mxu0 %v763
    %1086 = vmatprep.subr.mxu0 0.0
    %1087 = vmatpush2.msra.mxu0 %v762
    %1088 = vmatprep.subr.mxu0 0.0
    %1089 = vmatpush2.msra.mxu0 %v761
    %1090 = vmatprep.subr.mxu0 0.0
    %1091 = vmatpush2.msra.mxu0 %v760
    %1092 = vmatprep.subr.mxu0 0.0
    %1093 = vmatpush2.msra.mxu0 %v759
    %1094 = vmatprep.subr.mxu0 0.0
    %1095 = vmatpush2.msra.mxu0 %v758
    %1096 = vmatprep.subr.mxu0 0.0
    %1097 = vmatpush2.msra.mxu0 %v757
    %1098 = vmatprep.mubr.f32.mxu0 %v815
    %1099 = vmatmul.mubr.f32.gmra.mxu0 %v813
    %v1100 = vpop.f32.mrf.mxu0
    %v1101 = vadd.f32 %v1031, %v1100
    %v1102 = vpop.f32.mrf.mxu0
    %1103 = vdwg.mxu0
    %v1104 = vmax.f32 %v1101, 0.0
    %v1105 = vld [vmem:[%s7] sm:$0xff]
    %v1106 = vld [vmem:[%s7 + $0x8] sm:$0xff]
    %v1107 = vld [vmem:[%s7 + $0x10] sm:$0xff]
    %v1108 = vld [vmem:[%s7 + $0x18] sm:$0xff]
    %v1109 = vld [vmem:[%s7 + $0x20] sm:$0xff]
    %v1110 = vld [vmem:[%s7 + $0x28] sm:$0xff]
    %v1111 = vld [vmem:[%s7 + $0x30] sm:$0xff]
    %v1112 = vld [vmem:[%s7 + $0x38] sm:$0xff]
    %v1113 = vld [vmem:[%s7 + $0x40] sm:$0xff]
    %v1114 = vld [vmem:[%s7 + $0x48] sm:$0xff]
    %v1115 = vld [vmem:[%s7 + $0x50] sm:$0xff]
    %v1116 = vld [vmem:[%s7 + $0x58] sm:$0xff]
    %v1117 = vld [vmem:[%s7 + $0x60] sm:$0xff]
    %v1118 = vld [vmem:[%s7 + $0x68] sm:$0xff]
    %v1119 = vld [vmem:[%s7 + $0x70] sm:$0xff]
    %v1120 = vld [vmem:[%s7 + $0x78] sm:$0xff]
    %v1121 = vld [vmem:[%s8] sm:$0x1]
    %v1123 = vlaneseq
    %v1124 = vshrl.u32 %v1123, 7
    %v1125 = vsub.s32 0, %v1124
    %v1126 = vrot.slane %v1121, %v1125
    %1128 = vmatprep.subr.mxu0 0.0
    %1129 = vmatpush1.msra.mxu0 %v1120
    %1130 = vmatprep.subr.mxu0 0.0
    %1131 = vmatpush1.msra.mxu0 %v1119
    %1132 = vmatprep.subr.mxu0 0.0
    %1133 = vmatpush1.msra.mxu0 %v1118
    %1134 = vmatprep.subr.mxu0 0.0
    %1135 = vmatpush1.msra.mxu0 %v1117
    %1136 = vmatprep.subr.mxu0 0.0
    %1137 = vmatpush1.msra.mxu0 %v1116
    %1138 = vmatprep.subr.mxu0 0.0
    %1139 = vmatpush1.msra.mxu0 %v1115
    %1140 = vmatprep.subr.mxu0 0.0
    %1141 = vmatpush1.msra.mxu0 %v1114
    %1142 = vmatprep.subr.mxu0 0.0
    %1143 = vmatpush1.msra.mxu0 %v1113
    %1144 = vmatprep.subr.mxu0 0.0
    %1145 = vmatpush1.msra.mxu0 %v1112
    %1146 = vmatprep.subr.mxu0 0.0
    %1147 = vmatpush1.msra.mxu0 %v1111
    %1148 = vmatprep.subr.mxu0 0.0
    %1149 = vmatpush1.msra.mxu0 %v1110
    %1150 = vmatprep.subr.mxu0 0.0
    %1151 = vmatpush1.msra.mxu0 %v1109
    %1152 = vmatprep.subr.mxu0 0.0
    %1153 = vmatpush1.msra.mxu0 %v1108
    %1154 = vmatprep.subr.mxu0 0.0
    %1155 = vmatpush1.msra.mxu0 %v1107
    %1156 = vmatprep.subr.mxu0 0.0
    %1157 = vmatpush1.msra.mxu0 %v1106
    %1158 = vmatprep.subr.mxu0 0.0
    %1159 = vmatpush1.msra.mxu0 %v1105
    %1160 = vmatprep.subr.mxu0 0.0
    %1161 = vmatpush2.msra.mxu0 0.0
    %1162 = vmatprep.subr.mxu0 0.0
    %1163 = vmatpush2.msra.mxu0 0.0
    %1164 = vmatprep.subr.mxu0 0.0
    %1165 = vmatpush2.msra.mxu0 0.0
    %1166 = vmatprep.subr.mxu0 0.0
    %1167 = vmatpush2.msra.mxu0 0.0
    %1168 = vmatprep.subr.mxu0 0.0
    %1169 = vmatpush2.msra.mxu0 0.0
    %1170 = vmatprep.subr.mxu0 0.0
    %1171 = vmatpush2.msra.mxu0 0.0
    %1172 = vmatprep.subr.mxu0 0.0
    %1173 = vmatpush2.msra.mxu0 0.0
    %1174 = vmatprep.subr.mxu0 0.0
    %1175 = vmatpush2.msra.mxu0 0.0
    %1176 = vmatprep.subr.mxu0 0.0
    %1177 = vmatpush2.msra.mxu0 0.0
    %1178 = vmatprep.subr.mxu0 0.0
    %1179 = vmatpush2.msra.mxu0 0.0
    %1180 = vmatprep.subr.mxu0 0.0
    %1181 = vmatpush2.msra.mxu0 0.0
    %1182 = vmatprep.subr.mxu0 0.0
    %1183 = vmatpush2.msra.mxu0 0.0
    %1184 = vmatprep.subr.mxu0 0.0
    %1185 = vmatpush2.msra.mxu0 0.0
    %1186 = vmatprep.subr.mxu0 0.0
    %1187 = vmatpush2.msra.mxu0 0.0
    %1188 = vmatprep.subr.mxu0 0.0
    %1189 = vmatpush2.msra.mxu0 0.0
    %1190 = vmatprep.subr.mxu0 0.0
    %1191 = vmatpush2.msra.mxu0 0.0
    %1192 = vmatprep.mubr.f32.mxu0 0.0
    %1193 = vmatmul.mubr.f32.gmra.mxu0 %v1104
    %v1194 = vpop.f32.mrf.mxu0
    %v1195 = vadd.f32 %v1126, %v1194
    %v1196 = vpop.f32.mrf.mxu0
    %1197 = vdwg.mxu0
    %1198 = vst [vmem:[%s11] sm:$0x3] %v1195
    %v1199 = vld [vmem:[%s9] sm:$0x1]
    %v1201 = vlaneseq
    %v1202 = vshrl.u32 %v1201, 7
    %v1203 = vsub.s32 0, %v1202
    %v1204 = vrot.slane %v1199, %v1203
    %vm1206 = vcmp.gt.f32.partialorder %v1195, %v1204
    %v1207 = vsel %vm1206, 1, 0
    %1208 = vst [vmem:[%s12] sm:$0x3] %v1207
    // Predicated region
    $region42: #{contranet_dict_forward.1} parent=1 // pred_check
      _
    $region43: #{contranet_dict_forward.1} parent=1 // pred_check_branch
      %1210 = sbr.rel (0) target = $region45
    $region44: #{contranet_dict_forward.1} parent=1 // pred_region
      %s1212 = ssub.s32 32, 32
      %1213 = vsyncadd [#allocation3], %s1212
      %s1215 = sshll.u32 [#allocation2], 4
      %s1216 = int_to_ptr.vmem [resolvable:$true] %s1215
      %1218 = dma.vmem_to_hbm [thread:$0]  %s1216, 32, %s10, [#allocation3]
    $region45: #{contranet_dict_forward.1} parent=1 // pred_fallthru
      _
    // Predicated region
    $region46: #{contranet_dict_forward.1} parent=1 // pred_check
      _
    $region47: #{contranet_dict_forward.1} parent=1 // pred_check_branch
      %1220 = sbr.rel (0) target = $region49
    $region48: #{contranet_dict_forward.1} parent=1 // pred_region
      _
    $region49: #{contranet_dict_forward.1} parent=1 // pred_fallthru
      _
    // Predicated region
    $region50: #{contranet_dict_forward.1} parent=1 // pred_check
      _
    $region51: #{contranet_dict_forward.1} parent=1 // pred_check_branch
      %1222 = sbr.rel (0) target = $region53
    $region52: #{contranet_dict_forward.1} parent=1 // pred_region
      _
    $region53: #{contranet_dict_forward.1} parent=1 // pred_fallthru
      _
    // Predicated region
    $region54: #{contranet_dict_forward.1} parent=1 // pred_check
      _
    $region55: #{contranet_dict_forward.1} parent=1 // pred_check_branch
      %1224 = sbr.rel (0) target = $region57
    $region56: #{contranet_dict_forward.1} parent=1 // pred_region
      %1225 = dma.done [#allocation3], 32
    $region57: #{contranet_dict_forward.1} parent=1 // pred_fallthru
      _
    // Predicated region
    $region58: #{contranet_dict_forward.1} parent=1 // pred_check
      _
    $region59: #{contranet_dict_forward.1} parent=1 // pred_check_branch
      %1227 = sbr.rel (0) target = $region61
    $region60: #{contranet_dict_forward.1} parent=1 // pred_region
      _
    $region61: #{contranet_dict_forward.1} parent=1 // pred_fallthru
      _
    // Predicated region
    $region62: #{contranet_dict_forward.1} parent=1 // pred_check
      _
    $region63: #{contranet_dict_forward.1} parent=1 // pred_check_branch
      %1229 = sbr.rel (0) target = $region65
    $region64: #{contranet_dict_forward.1} parent=1 // pred_region
      _
    $region65: #{contranet_dict_forward.1} parent=1 // pred_fallthru
      _
    %1230 = vsyncpa [#allocation3], 1

</llo_original>
